<compile_context>
chip_gen: v7x
topology: tpu7x:2x2x1
jax: 0.10.0
libtpu: 0.0.40
codegen_flags: <defaults>
</compile_context>

<pallas_src>
import jax
import jax.numpy as jnp
from jax.experimental import pallas as pl
from jax.experimental.pallas import tpu as pltpu

LN_EPS = 1e-5


def cls_reg_kernel(q_ref, kp_ref, vp_ref, maskb_ref, inp_ref,
                   wq_ref, wo_ref, w1_ref, w2_ref,
                   vecs_ref, b1_ref, o_ref):
    f32 = jnp.float32
    bf16 = jnp.bfloat16

    # packed per-channel vectors: [bq(scaled), bo, b2, g1, be1, g2, be2]  (7, D) f32
    vecs = vecs_ref[...]
    bq, bo, b2 = vecs[0:1], vecs[1:2], vecs[2:3]
    g1, be1, g2, be2 = vecs[3:4], vecs[4:5], vecs[5:6], vecs[6:7]

    # --- single-head cross attention (heads_num = 1) ---
    # q projection; the 1/sqrt(D) softmax scale is already folded into wq/bq.
    q = jnp.dot(q_ref[...], wq_ref[...], preferred_element_type=f32) + bq

    # scores = (scaled q) @ k_proj^T  — NT contraction, no in-kernel transpose.
    scores = jax.lax.dot_general(
        q.astype(bf16), kp_ref[...],
        dimension_numbers=(((1,), (1,)), ((), ())),
        preferred_element_type=f32)
    # additive mask bias: 0 for valid keys, -1e30 for padded keys (f32).
    scores = scores + maskb_ref[...]

    m = jnp.max(scores, axis=-1, keepdims=True)
    e = jnp.exp(scores - m)
    denom = jnp.sum(e, axis=-1, keepdims=True)
    p = e * pl.reciprocal(denom, approx=True)                   # softmax over keys

    attn = jnp.dot(p.astype(bf16), vp_ref[...], preferred_element_type=f32)
    ca = jnp.dot(attn.astype(bf16), wo_ref[...], preferred_element_type=f32) + bo

    # --- residual + LayerNorm 1 (dropout == identity at inference) ---
    x = inp_ref[...] + ca                                       # inp stays f32
    mu = jnp.mean(x, axis=-1, keepdims=True)
    var = jnp.mean(x * x, axis=-1, keepdims=True) - mu * mu     # fused stats
    x = (x - mu) * jax.lax.rsqrt(var + LN_EPS) * g1 + be1

    # --- FFN: fc1 -> relu -> fc2, residual, LayerNorm 2 ---
    h = jnp.dot(x.astype(bf16), w1_ref[...], preferred_element_type=f32) + b1_ref[...]
    h = jnp.maximum(h, 0.0)
    r = jnp.dot(h.astype(bf16), w2_ref[...], preferred_element_type=f32) + b2

    x = x + r
    mu = jnp.mean(x, axis=-1, keepdims=True)
    var = jnp.mean(x * x, axis=-1, keepdims=True) - mu * mu
    x = (x - mu) * jax.lax.rsqrt(var + LN_EPS) * g2 + be2

    o_ref[...] = x.astype(o_ref.dtype)


def cls_reg_branch(inputs, query, key, value, key_mask, params):
    """inputs: (Lq, 1, D); query: (Lq, D); key/value: (Lk, D); key_mask: (1, Lk) float (1=pad).

    Returns (Lq, 1, D) bf16.
    """
    Lq, B, D = inputs.shape
    assert B == 1
    Lk = key.shape[0]
    Dh = params["w1"].shape[0]          # 4*D

    f32, bf16 = jnp.float32, jnp.bfloat16

    # --- hoisted, one-time work (wrapper side) ---
    scale = 1.0 / jnp.sqrt(jnp.asarray(D, f32))

    # K / V projections computed once (f32 matmul), handed to the kernel in bf16.
    k_proj = (key.astype(f32) @ params["wk"].T.astype(f32)
              + params["bk"].reshape(1, D)).astype(bf16)
    v_proj = (value.astype(f32) @ params["wv"].T.astype(f32)
              + params["bv"].reshape(1, D)).astype(bf16)

    # activations: query in bf16 (MXU operand), residual input kept f32.
    q2d = query.astype(bf16)
    inp2d = inputs.reshape(Lq, D).astype(f32)
    mask_bias = key_mask.astype(f32).reshape(1, Lk) * jnp.float32(-1e30)

    # pre-transposed bf16 weights; softmax scale folded into wq / bq.
    wq_t = (params["wq"].T.astype(f32) * scale).astype(bf16)
    wo_t = params["wo"].T.astype(bf16)
    w1_t = params["w1"].T.astype(bf16)   # (D, 4D)
    w2_t = params["w2"].T.astype(bf16)   # (4D, D)

    # pack all (1, D) bias / LayerNorm vectors into one (7, D) f32 array.
    vecs = jnp.concatenate([
        params["bq"].reshape(1, D).astype(f32) * scale,
        params["bo"].reshape(1, D),
        params["b2"].reshape(1, D),
        params["g1"].reshape(1, D), params["be1"].reshape(1, D),
        params["g2"].reshape(1, D), params["be2"].reshape(1, D),
    ], axis=0).astype(f32)
    b1 = params["b1"].reshape(1, Dh).astype(f32)

    # --- query-axis tiling ---
    # Aim for >= 2 grid steps (v7x megacore sharding across 2 TCs), sublane (8)
    # aligned, capped at 256 rows (safe for v7x's 64 MiB VMEM at D=256).
    half = (Lq + 1) // 2
    tile = ((half + 7) // 8) * 8
    tile = max(8, min(tile, 256))
    tile = min(tile, Lq)                 # full-extent block when Lq is tiny
    n_tiles = pl.cdiv(Lq, tile)

    row_spec = pl.BlockSpec((tile, D), lambda i: (i, 0))

    def const(shape):
        # K/V, weights and packed vectors: DMA'd once, VMEM-resident across tiles.
        return pl.BlockSpec(shape, lambda i: (0, 0))

    out2d = pl.pallas_call(
        cls_reg_kernel,
        out_shape=jax.ShapeDtypeStruct((Lq, D), jnp.bfloat16),
        grid=(n_tiles,),
        in_specs=[
            row_spec,                       # query tile (bf16)
            const((Lk, D)),                 # projected K (bf16)
            const((Lk, D)),                 # projected V (bf16)
            const((1, Lk)),                 # additive mask bias (f32)
            row_spec,                       # inputs tile / residual (f32)
            const((D, D)),                  # wq^T * scale
            const((D, D)),                  # wo^T
            const((D, Dh)),                 # w1^T
            const((Dh, D)),                 # w2^T
            const((7, D)),                  # packed bias / LN vectors
            const((1, Dh)),                 # b1
        ],
        out_specs=row_spec,
        compiler_params=pltpu.CompilerParams(
            dimension_semantics=("parallel",),
            vmem_limit_bytes=32 * 1024 * 1024),
    )(q2d, k_proj, v_proj, mask_bias, inp2d,
      wq_t, wo_t, w1_t, w2_t, vecs, b1)

    return out2d.reshape(Lq, 1, D)


def _reference(inputs, query, key, value, key_mask, p):
    """Pure-JAX f32 reference mirroring the PyTorch forward (eval mode)."""
    Lq, _, D = inputs.shape
    x0 = inputs.reshape(Lq, D)
    q = query @ p["wq"].T + p["bq"]
    k = key @ p["wk"].T + p["bk"]
    v = value @ p["wv"].T + p["bv"]
    scores = (q @ k.T) / jnp.sqrt(jnp.asarray(D, jnp.float32))
    scores = jnp.where(key_mask > 0.5, -1e30, scores)
    attn = jax.nn.softmax(scores, axis=-1) @ v
    ca = attn @ p["wo"].T + p["bo"]
    x = x0 + ca
    x = (x - x.mean(-1, keepdims=True)) / jnp.sqrt(x.var(-1, keepdims=True) + LN_EPS)
    x = x * p["g1"] + p["be1"]
    r = jnp.maximum(x @ p["w1"].T + p["b1"], 0.0) @ p["w2"].T + p["b2"]
    x = x + r
    x = (x - x.mean(-1, keepdims=True)) / jnp.sqrt(x.var(-1, keepdims=True) + LN_EPS)
    x = x * p["g2"] + p["be2"]
    return x.reshape(Lq, 1, D)


def make_params(key, D):
    ks = jax.random.split(key, 8)
    s = 0.02
    f = jnp.float32
    return {
        "wq": s * jax.random.normal(ks[0], (D, D), f),
        "bq": jnp.zeros((1, D), f),
        "wk": s * jax.random.normal(ks[1], (D, D), f),
        "bk": jnp.zeros((1, D), f),
        "wv": s * jax.random.normal(ks[2], (D, D), f),
        "bv": jnp.zeros((1, D), f),
        "wo": s * jax.random.normal(ks[3], (D, D), f),
        "bo": jnp.zeros((1, D), f),
        "w1": s * jax.random.normal(ks[4], (4 * D, D), f),
        "b1": jnp.zeros((1, 4 * D), f),
        "w2": s * jax.random.normal(ks[5], (D, 4 * D), f),
        "b2": jnp.zeros((1, D), f),
        "g1": jnp.ones((1, D), f),
        "be1": jnp.zeros((1, D), f),
        "g2": jnp.ones((1, D), f),
        "be2": jnp.zeros((1, D), f),
    }


if __name__ == "__main__":
    D = 32      # hidden_dim (small for test; module default is 256)
    Lq = 8      # number of queries (batch axis added by unsqueeze(1) is 1)
    Lk = 8      # number of keys / values

    root = jax.random.PRNGKey(0)
    k_in, k_q, k_k, k_v, k_p = jax.random.split(root, 5)

    inputs = jax.random.normal(k_in, (Lq, 1, D), jnp.float32)
    query = jax.random.normal(k_q, (Lq, D), jnp.float32)
    key = jax.random.normal(k_k, (Lk, D), jnp.float32)
    value = jax.random.normal(k_v, (Lk, D), jnp.float32)
    # key_padding_mask: last two key positions are padding (True -> ignore)
    key_mask = jnp.concatenate(
        [jnp.zeros((1, Lk - 2), jnp.float32), jnp.ones((1, 2), jnp.float32)], axis=1
    )

    params = make_params(k_p, D)

    out = cls_reg_branch(inputs, query, key, value, key_mask, params)
    out = jax.block_until_ready(out)

    ref = _reference(inputs, query, key, value, key_mask, params)
    assert out.shape == (Lq, 1, D)
    # bf16 matmul operands + bf16 output + approx reciprocal -> loose tolerance.
    max_err = float(jnp.max(jnp.abs(out.astype(jnp.float32) - ref)))
    assert max_err < 5e-2, f"mismatch vs pure-JAX reference (max abs err {max_err})"

    print("KERNEL_OK")
</pallas_src>

<mosaic_0001>
module attributes {stable_mosaic.version = 11 : i64} {
  func.func @cls_reg_kernel(%arg0: i32, %arg1: memref<8x32xbf16, #tpu.memory_space<vmem>>, %arg2: memref<8x32xbf16, #tpu.memory_space<vmem>>, %arg3: memref<8x32xbf16, #tpu.memory_space<vmem>>, %arg4: memref<1x8xf32, #tpu.memory_space<vmem>>, %arg5: memref<8x32xf32, #tpu.memory_space<vmem>>, %arg6: memref<32x32xbf16, #tpu.memory_space<vmem>>, %arg7: memref<32x32xbf16, #tpu.memory_space<vmem>>, %arg8: memref<32x128xbf16, #tpu.memory_space<vmem>>, %arg9: memref<128x32xbf16, #tpu.memory_space<vmem>>, %arg10: memref<7x32xf32, #tpu.memory_space<vmem>>, %arg11: memref<1x128xf32, #tpu.memory_space<vmem>>, %arg12: memref<8x32xbf16, #tpu.memory_space<vmem>>) attributes {dimension_semantics = [#tpu.dimension_semantics<parallel>], iteration_bounds = array<i64: 1>, scalar_prefetch = 0 : i64, scratch_operands = 0 : i64, tpu.core_type = #tpu.core_type<tc>, window_params = [{transform_indices = @transform_0, window_bounds = array<i64: 8, 32>}, {pipeline_mode = #tpu.pipeline_mode<synchronous>, transform_indices = @transform_1, window_bounds = array<i64: 8, 32>}, {pipeline_mode = #tpu.pipeline_mode<synchronous>, transform_indices = @transform_2, window_bounds = array<i64: 8, 32>}, {pipeline_mode = #tpu.pipeline_mode<synchronous>, transform_indices = @transform_3, window_bounds = array<i64: 1, 8>}, {transform_indices = @transform_4, window_bounds = array<i64: 8, 32>}, {pipeline_mode = #tpu.pipeline_mode<synchronous>, transform_indices = @transform_5, window_bounds = array<i64: 32, 32>}, {pipeline_mode = #tpu.pipeline_mode<synchronous>, transform_indices = @transform_6, window_bounds = array<i64: 32, 32>}, {pipeline_mode = #tpu.pipeline_mode<synchronous>, transform_indices = @transform_7, window_bounds = array<i64: 32, 128>}, {pipeline_mode = #tpu.pipeline_mode<synchronous>, transform_indices = @transform_8, window_bounds = array<i64: 128, 32>}, {pipeline_mode = #tpu.pipeline_mode<synchronous>, transform_indices = @transform_9, window_bounds = array<i64: 7, 32>}, {pipeline_mode = #tpu.pipeline_mode<synchronous>, transform_indices = @transform_10, window_bounds = array<i64: 1, 128>}, {transform_indices = @transform_11, window_bounds = array<i64: 8, 32>}]} {
    %c0 = arith.constant 0 : index
    %c0_0 = arith.constant 0 : index
    %0 = vector.load %arg10[%c0, %c0_0] : memref<7x32xf32, #tpu.memory_space<vmem>>, vector<7x32xf32>
    %1 = vector.extract_strided_slice %0 {offsets = [0, 0], sizes = [1, 32], strides = [1, 1]} : vector<7x32xf32> to vector<1x32xf32>
    %2 = vector.extract_strided_slice %0 {offsets = [1, 0], sizes = [1, 32], strides = [1, 1]} : vector<7x32xf32> to vector<1x32xf32>
    %3 = vector.extract_strided_slice %0 {offsets = [2, 0], sizes = [1, 32], strides = [1, 1]} : vector<7x32xf32> to vector<1x32xf32>
    %4 = vector.extract_strided_slice %0 {offsets = [3, 0], sizes = [1, 32], strides = [1, 1]} : vector<7x32xf32> to vector<1x32xf32>
    %5 = vector.extract_strided_slice %0 {offsets = [4, 0], sizes = [1, 32], strides = [1, 1]} : vector<7x32xf32> to vector<1x32xf32>
    %6 = vector.extract_strided_slice %0 {offsets = [5, 0], sizes = [1, 32], strides = [1, 1]} : vector<7x32xf32> to vector<1x32xf32>
    %7 = vector.extract_strided_slice %0 {offsets = [6, 0], sizes = [1, 32], strides = [1, 1]} : vector<7x32xf32> to vector<1x32xf32>
    %c0_1 = arith.constant 0 : index
    %c0_2 = arith.constant 0 : index
    %8 = vector.load %arg1[%c0_1, %c0_2] : memref<8x32xbf16, #tpu.memory_space<vmem>>, vector<8x32xbf16>
    %c0_3 = arith.constant 0 : index
    %c0_4 = arith.constant 0 : index
    %9 = vector.load %arg6[%c0_3, %c0_4] : memref<32x32xbf16, #tpu.memory_space<vmem>>, vector<32x32xbf16>
    %cst = arith.constant dense<0.000000e+00> : vector<8x32xf32>
    %10 = tpu.matmul %8, %9, %cst {dimension_numbers = #tpu.dot_dimension_numbers<[1], [0], [0], [1], [0, 0, 1, 1], [], []>} : vector<8x32xbf16>, vector<32x32xbf16>, vector<8x32xf32> -> vector<8x32xf32>
    %11 = vector.broadcast %1 : vector<1x32xf32> to vector<8x32xf32>
    %12 = arith.addf %10, %11 : vector<8x32xf32>
    %13 = arith.truncf %12 : vector<8x32xf32> to vector<8x32xbf16>
    %c0_5 = arith.constant 0 : index
    %c0_6 = arith.constant 0 : index
    %14 = vector.load %arg2[%c0_5, %c0_6] : memref<8x32xbf16, #tpu.memory_space<vmem>>, vector<8x32xbf16>
    %cst_7 = arith.constant dense<0.000000e+00> : vector<8x8xf32>
    %15 = tpu.matmul %13, %14, %cst_7 {dimension_numbers = #tpu.dot_dimension_numbers<[1], [1], [0], [0], [0, 0, 1, 0], [], []>} : vector<8x32xbf16>, vector<8x32xbf16>, vector<8x8xf32> -> vector<8x8xf32>
    %c0_8 = arith.constant 0 : index
    %c0_9 = arith.constant 0 : index
    %16 = vector.load %arg4[%c0_8, %c0_9] : memref<1x8xf32, #tpu.memory_space<vmem>>, vector<1x8xf32>
    %17 = vector.broadcast %16 : vector<1x8xf32> to vector<8x8xf32>
    %18 = arith.addf %15, %17 : vector<8x8xf32>
    %cst_10 = arith.constant dense<0xFF800000> : vector<8xf32>
    %19 = vector.multi_reduction <maximumf>, %18, %cst_10 [1] : vector<8x8xf32> to vector<8xf32>
    %20 = vector.shape_cast %19 : vector<8xf32> to vector<8x1xf32>
    %21 = vector.broadcast %20 : vector<8x1xf32> to vector<8x8xf32>
    %22 = arith.subf %18, %21 : vector<8x8xf32>
    %23 = math.exp %22 : vector<8x8xf32>
    %cst_11 = arith.constant dense<0.000000e+00> : vector<8xf32>
    %24 = vector.multi_reduction <add>, %23, %cst_11 [1] : vector<8x8xf32> to vector<8xf32>
    %25 = vector.shape_cast %24 : vector<8xf32> to vector<8x1xf32>
    %26 = tpu.reciprocal %25 {approx = true} : vector<8x1xf32> -> vector<8x1xf32>
    %27 = vector.broadcast %26 : vector<8x1xf32> to vector<8x8xf32>
    %28 = arith.mulf %23, %27 : vector<8x8xf32>
    %29 = arith.truncf %28 : vector<8x8xf32> to vector<8x8xbf16>
    %c0_12 = arith.constant 0 : index
    %c0_13 = arith.constant 0 : index
    %30 = vector.load %arg3[%c0_12, %c0_13] : memref<8x32xbf16, #tpu.memory_space<vmem>>, vector<8x32xbf16>
    %cst_14 = arith.constant dense<0.000000e+00> : vector<8x32xf32>
    %31 = tpu.matmul %29, %30, %cst_14 {dimension_numbers = #tpu.dot_dimension_numbers<[1], [0], [0], [1], [0, 0, 1, 1], [], []>} : vector<8x8xbf16>, vector<8x32xbf16>, vector<8x32xf32> -> vector<8x32xf32>
    %32 = arith.truncf %31 : vector<8x32xf32> to vector<8x32xbf16>
    %c0_15 = arith.constant 0 : index
    %c0_16 = arith.constant 0 : index
    %33 = vector.load %arg7[%c0_15, %c0_16] : memref<32x32xbf16, #tpu.memory_space<vmem>>, vector<32x32xbf16>
    %cst_17 = arith.constant dense<0.000000e+00> : vector<8x32xf32>
    %34 = tpu.matmul %32, %33, %cst_17 {dimension_numbers = #tpu.dot_dimension_numbers<[1], [0], [0], [1], [0, 0, 1, 1], [], []>} : vector<8x32xbf16>, vector<32x32xbf16>, vector<8x32xf32> -> vector<8x32xf32>
    %35 = vector.broadcast %2 : vector<1x32xf32> to vector<8x32xf32>
    %36 = arith.addf %34, %35 : vector<8x32xf32>
    %c0_18 = arith.constant 0 : index
    %c0_19 = arith.constant 0 : index
    %37 = vector.load %arg5[%c0_18, %c0_19] : memref<8x32xf32, #tpu.memory_space<vmem>>, vector<8x32xf32>
    %38 = arith.addf %37, %36 : vector<8x32xf32>
    %cst_20 = arith.constant dense<0.000000e+00> : vector<8xf32>
    %39 = vector.multi_reduction <add>, %38, %cst_20 [1] : vector<8x32xf32> to vector<8xf32>
    %40 = vector.shape_cast %39 : vector<8xf32> to vector<8x1xf32>
    %cst_21 = arith.constant 3.200000e+01 : f32
    %41 = vector.broadcast %cst_21 : f32 to vector<8x1xf32>
    %42 = arith.divf %40, %41 : vector<8x1xf32>
    %43 = arith.mulf %38, %38 : vector<8x32xf32>
    %cst_22 = arith.constant dense<0.000000e+00> : vector<8xf32>
    %44 = vector.multi_reduction <add>, %43, %cst_22 [1] : vector<8x32xf32> to vector<8xf32>
    %45 = vector.shape_cast %44 : vector<8xf32> to vector<8x1xf32>
    %cst_23 = arith.constant 3.200000e+01 : f32
    %46 = vector.broadcast %cst_23 : f32 to vector<8x1xf32>
    %47 = arith.divf %45, %46 : vector<8x1xf32>
    %48 = arith.mulf %42, %42 : vector<8x1xf32>
    %49 = arith.subf %47, %48 : vector<8x1xf32>
    %50 = vector.broadcast %42 : vector<8x1xf32> to vector<8x32xf32>
    %51 = arith.subf %38, %50 : vector<8x32xf32>
    %cst_24 = arith.constant 9.99999974E-6 : f32
    %52 = vector.broadcast %cst_24 : f32 to vector<8x1xf32>
    %53 = arith.addf %49, %52 : vector<8x1xf32>
    %54 = math.rsqrt %53 : vector<8x1xf32>
    %55 = vector.broadcast %54 : vector<8x1xf32> to vector<8x32xf32>
    %56 = arith.mulf %51, %55 : vector<8x32xf32>
    %57 = vector.broadcast %4 : vector<1x32xf32> to vector<8x32xf32>
    %58 = arith.mulf %56, %57 : vector<8x32xf32>
    %59 = vector.broadcast %5 : vector<1x32xf32> to vector<8x32xf32>
    %60 = arith.addf %58, %59 : vector<8x32xf32>
    %61 = arith.truncf %60 : vector<8x32xf32> to vector<8x32xbf16>
    %c0_25 = arith.constant 0 : index
    %c0_26 = arith.constant 0 : index
    %62 = vector.load %arg8[%c0_25, %c0_26] : memref<32x128xbf16, #tpu.memory_space<vmem>>, vector<32x128xbf16>
    %cst_27 = arith.constant dense<0.000000e+00> : vector<8x128xf32>
    %63 = tpu.matmul %61, %62, %cst_27 {dimension_numbers = #tpu.dot_dimension_numbers<[1], [0], [0], [1], [0, 0, 1, 1], [], []>} : vector<8x32xbf16>, vector<32x128xbf16>, vector<8x128xf32> -> vector<8x128xf32>
    %c0_28 = arith.constant 0 : index
    %c0_29 = arith.constant 0 : index
    %64 = vector.load %arg11[%c0_28, %c0_29] : memref<1x128xf32, #tpu.memory_space<vmem>>, vector<1x128xf32>
    %65 = vector.broadcast %64 : vector<1x128xf32> to vector<8x128xf32>
    %66 = arith.addf %63, %65 : vector<8x128xf32>
    %cst_30 = arith.constant 0.000000e+00 : f32
    %67 = vector.broadcast %cst_30 : f32 to vector<8x128xf32>
    %68 = arith.maximumf %66, %67 : vector<8x128xf32>
    %69 = arith.truncf %68 : vector<8x128xf32> to vector<8x128xbf16>
    %c0_31 = arith.constant 0 : index
    %c0_32 = arith.constant 0 : index
    %70 = vector.load %arg9[%c0_31, %c0_32] : memref<128x32xbf16, #tpu.memory_space<vmem>>, vector<128x32xbf16>
    %cst_33 = arith.constant dense<0.000000e+00> : vector<8x32xf32>
    %71 = tpu.matmul %69, %70, %cst_33 {dimension_numbers = #tpu.dot_dimension_numbers<[1], [0], [0], [1], [0, 0, 1, 1], [], []>} : vector<8x128xbf16>, vector<128x32xbf16>, vector<8x32xf32> -> vector<8x32xf32>
    %72 = vector.broadcast %3 : vector<1x32xf32> to vector<8x32xf32>
    %73 = arith.addf %71, %72 : vector<8x32xf32>
    %74 = arith.addf %60, %73 : vector<8x32xf32>
    %cst_34 = arith.constant dense<0.000000e+00> : vector<8xf32>
    %75 = vector.multi_reduction <add>, %74, %cst_34 [1] : vector<8x32xf32> to vector<8xf32>
    %76 = vector.shape_cast %75 : vector<8xf32> to vector<8x1xf32>
    %cst_35 = arith.constant 3.200000e+01 : f32
    %77 = vector.broadcast %cst_35 : f32 to vector<8x1xf32>
    %78 = arith.divf %76, %77 : vector<8x1xf32>
    %79 = arith.mulf %74, %74 : vector<8x32xf32>
    %cst_36 = arith.constant dense<0.000000e+00> : vector<8xf32>
    %80 = vector.multi_reduction <add>, %79, %cst_36 [1] : vector<8x32xf32> to vector<8xf32>
    %81 = vector.shape_cast %80 : vector<8xf32> to vector<8x1xf32>
    %cst_37 = arith.constant 3.200000e+01 : f32
    %82 = vector.broadcast %cst_37 : f32 to vector<8x1xf32>
    %83 = arith.divf %81, %82 : vector<8x1xf32>
    %84 = arith.mulf %78, %78 : vector<8x1xf32>
    %85 = arith.subf %83, %84 : vector<8x1xf32>
    %86 = vector.broadcast %78 : vector<8x1xf32> to vector<8x32xf32>
    %87 = arith.subf %74, %86 : vector<8x32xf32>
    %cst_38 = arith.constant 9.99999974E-6 : f32
    %88 = vector.broadcast %cst_38 : f32 to vector<8x1xf32>
    %89 = arith.addf %85, %88 : vector<8x1xf32>
    %90 = math.rsqrt %89 : vector<8x1xf32>
    %91 = vector.broadcast %90 : vector<8x1xf32> to vector<8x32xf32>
    %92 = arith.mulf %87, %91 : vector<8x32xf32>
    %93 = vector.broadcast %6 : vector<1x32xf32> to vector<8x32xf32>
    %94 = arith.mulf %92, %93 : vector<8x32xf32>
    %95 = vector.broadcast %7 : vector<1x32xf32> to vector<8x32xf32>
    %96 = arith.addf %94, %95 : vector<8x32xf32>
    %97 = arith.truncf %96 : vector<8x32xf32> to vector<8x32xbf16>
    %c0_39 = arith.constant 0 : index
    %c0_40 = arith.constant 0 : index
    %98 = vector.load %arg12[%c0_39, %c0_40] : memref<8x32xbf16, #tpu.memory_space<vmem>>, vector<8x32xbf16>
    tpu.vector_store %arg12[%c0_39, %c0_40], %97 {strides = array<i32>} : memref<8x32xbf16, #tpu.memory_space<vmem>>, vector<8x32xbf16>,
    return
  }
  func.func @transform_0(%arg0: i32) -> (i32, i32) {
    %c0_i32 = arith.constant 0 : i32
    %c0_i32_0 = arith.constant 0 : i32
    return %arg0, %c0_i32 : i32, i32
  }
  func.func @transform_1(%arg0: i32) -> (i32, i32) {
    %c0_i32 = arith.constant 0 : i32
    %c0_i32_0 = arith.constant 0 : i32
    %c0_i32_1 = arith.constant 0 : i32
    return %c0_i32, %c0_i32_0 : i32, i32
  }
  func.func @transform_2(%arg0: i32) -> (i32, i32) {
    %c0_i32 = arith.constant 0 : i32
    %c0_i32_0 = arith.constant 0 : i32
    %c0_i32_1 = arith.constant 0 : i32
    return %c0_i32, %c0_i32_0 : i32, i32
  }
  func.func @transform_3(%arg0: i32) -> (i32, i32) {
    %c0_i32 = arith.constant 0 : i32
    %c0_i32_0 = arith.constant 0 : i32
    %c0_i32_1 = arith.constant 0 : i32
    return %c0_i32, %c0_i32_0 : i32, i32
  }
  func.func @transform_4(%arg0: i32) -> (i32, i32) {
    %c0_i32 = arith.constant 0 : i32
    %c0_i32_0 = arith.constant 0 : i32
    return %arg0, %c0_i32 : i32, i32
  }
  func.func @transform_5(%arg0: i32) -> (i32, i32) {
    %c0_i32 = arith.constant 0 : i32
    %c0_i32_0 = arith.constant 0 : i32
    %c0_i32_1 = arith.constant 0 : i32
    return %c0_i32, %c0_i32_0 : i32, i32
  }
  func.func @transform_6(%arg0: i32) -> (i32, i32) {
    %c0_i32 = arith.constant 0 : i32
    %c0_i32_0 = arith.constant 0 : i32
    %c0_i32_1 = arith.constant 0 : i32
    return %c0_i32, %c0_i32_0 : i32, i32
  }
  func.func @transform_7(%arg0: i32) -> (i32, i32) {
    %c0_i32 = arith.constant 0 : i32
    %c0_i32_0 = arith.constant 0 : i32
    %c0_i32_1 = arith.constant 0 : i32
    return %c0_i32, %c0_i32_0 : i32, i32
  }
  func.func @transform_8(%arg0: i32) -> (i32, i32) {
    %c0_i32 = arith.constant 0 : i32
    %c0_i32_0 = arith.constant 0 : i32
    %c0_i32_1 = arith.constant 0 : i32
    return %c0_i32, %c0_i32_0 : i32, i32
  }
  func.func @transform_9(%arg0: i32) -> (i32, i32) {
    %c0_i32 = arith.constant 0 : i32
    %c0_i32_0 = arith.constant 0 : i32
    %c0_i32_1 = arith.constant 0 : i32
    return %c0_i32, %c0_i32_0 : i32, i32
  }
  func.func @transform_10(%arg0: i32) -> (i32, i32) {
    %c0_i32 = arith.constant 0 : i32
    %c0_i32_0 = arith.constant 0 : i32
    %c0_i32_1 = arith.constant 0 : i32
    return %c0_i32, %c0_i32_0 : i32, i32
  }
  func.func @transform_11(%arg0: i32) -> (i32, i32) {
    %c0_i32 = arith.constant 0 : i32
    %c0_i32_0 = arith.constant 0 : i32
    return %arg0, %c0_i32 : i32, i32
  }
}

</mosaic_0001>

<llo_original>
// kernel: tpu_custom_call.1
$region0: #{tpu_custom_call.1}
  #allocation0 [shape = 'u32[]', space=smem, size = 0x4, offset = 0x4, fixed_abs, tag = 'smem constant byte address 0x4 - core index']
  #allocation1 [shape = 'u32[144,128]{1,0:T(1,128)}', space=vmem, size = 0x12000, scoped, tag = 'internal scratch']
  %s0 = inlined_call_operand.vmem [shape: bf16[8,32], index: 0, kind: input, shape index: {}]
  %s1 = inlined_call_operand.vmem [shape: bf16[8,32], index: 1, kind: input, shape index: {}]
  %s2 = inlined_call_operand.vmem [shape: bf16[8,32], index: 2, kind: input, shape index: {}]
  %s3 = inlined_call_operand.vmem [shape: f32[1,8], index: 3, kind: input, shape index: {}]
  %s4 = inlined_call_operand.vmem [shape: f32[8,32], index: 4, kind: input, shape index: {}]
  %s5 = inlined_call_operand.vmem [shape: bf16[32,32], index: 5, kind: input, shape index: {}]
  %s6 = inlined_call_operand.vmem [shape: bf16[32,32], index: 6, kind: input, shape index: {}]
  %s7 = inlined_call_operand.vmem [shape: bf16[32,128], index: 7, kind: input, shape index: {}]
  %s8 = inlined_call_operand.vmem [shape: bf16[128,32], index: 8, kind: input, shape index: {}]
  %s9 = inlined_call_operand.vmem [shape: f32[7,32], index: 9, kind: input, shape index: {}]
  %s10 = inlined_call_operand.vmem [shape: f32[1,128], index: 10, kind: input, shape index: {}]
  %s11 = inlined_call_operand.hbm [shape: bf16[8,32], index: 11, kind: output, shape index: {}]
  %s12 = sld [smem:[#allocation0]]
  $region54: #{tpu_custom_call.1} parent=0
    _
  %s14 = ssub.s32 1, %s12
  %s15 = scalar_select 0, %s14, %s12
  $region1: #{tpu_custom_call.1} parent=0
    #allocation2 [shape = 'u8[2048]{0}', space=vmem, size = 0x800, scoped, tag = 'output window, operand 0, single buffered']
    #allocation3 [shape = 's32[1]{0}', space=sflag, size = 0x4, scoped, tag = 'scoped memory for tpu_custom_call.1']
    %16 = vsyncpa [#allocation3], 0
    // Predicated region
    $region2: #{tpu_custom_call.1} parent=1 // pred_check
      _
    $region3: #{tpu_custom_call.1} parent=1 // pred_check_branch
      %18 = sbr.rel (0) target = $region5
    $region4: #{tpu_custom_call.1} parent=1 // pred_region
      _
    $region5: #{tpu_custom_call.1} parent=1 // pred_fallthru
      _
    // Predicated region
    $region6: #{tpu_custom_call.1} parent=1 // pred_check
      _
    $region7: #{tpu_custom_call.1} parent=1 // pred_check_branch
      %20 = sbr.rel (0) target = $region9
    $region8: #{tpu_custom_call.1} parent=1 // pred_region
      _
    $region9: #{tpu_custom_call.1} parent=1 // pred_fallthru
      _
    // Predicated region
    $region10: #{tpu_custom_call.1} parent=1 // pred_check
      _
    $region11: #{tpu_custom_call.1} parent=1 // pred_check_branch
      %22 = sbr.rel (0) target = $region13
    $region12: #{tpu_custom_call.1} parent=1 // pred_region
      _
    $region13: #{tpu_custom_call.1} parent=1 // pred_fallthru
      _
    // Predicated region
    $region14: #{tpu_custom_call.1} parent=1 // pred_check
      _
    $region15: #{tpu_custom_call.1} parent=1 // pred_check_branch
      %24 = sbr.rel (0) target = $region17
    $region16: #{tpu_custom_call.1} parent=1 // pred_region
      _
    $region17: #{tpu_custom_call.1} parent=1 // pred_fallthru
      _
    // Predicated region
    $region18: #{tpu_custom_call.1} parent=1 // pred_check
      _
    $region19: #{tpu_custom_call.1} parent=1 // pred_check_branch
      %26 = sbr.rel (0) target = $region21
    $region20: #{tpu_custom_call.1} parent=1 // pred_region
      _
    $region21: #{tpu_custom_call.1} parent=1 // pred_fallthru
      _
    // Predicated region
    $region22: #{tpu_custom_call.1} parent=1 // pred_check
      _
    $region23: #{tpu_custom_call.1} parent=1 // pred_check_branch
      %28 = sbr.rel (0) target = $region25
    $region24: #{tpu_custom_call.1} parent=1 // pred_region
      _
    $region25: #{tpu_custom_call.1} parent=1 // pred_fallthru
      _
    // Predicated region
    $region26: #{tpu_custom_call.1} parent=1 // pred_check
      _
    $region27: #{tpu_custom_call.1} parent=1 // pred_check_branch
      %30 = sbr.rel (0) target = $region29
    $region28: #{tpu_custom_call.1} parent=1 // pred_region
      _
    $region29: #{tpu_custom_call.1} parent=1 // pred_fallthru
      _
    // Predicated region
    $region30: #{tpu_custom_call.1} parent=1 // pred_check
      _
    $region31: #{tpu_custom_call.1} parent=1 // pred_check_branch
      %32 = sbr.rel (0) target = $region33
    $region32: #{tpu_custom_call.1} parent=1 // pred_region
      _
    $region33: #{tpu_custom_call.1} parent=1 // pred_fallthru
      _
    // Predicated region
    $region34: #{tpu_custom_call.1} parent=1 // pred_check
      _
    $region35: #{tpu_custom_call.1} parent=1 // pred_check_branch
      %34 = sbr.rel (0) target = $region37
    $region36: #{tpu_custom_call.1} parent=1 // pred_region
      _
    $region37: #{tpu_custom_call.1} parent=1 // pred_fallthru
      _
    // Predicated region
    $region38: #{tpu_custom_call.1} parent=1 // pred_check
      _
    $region39: #{tpu_custom_call.1} parent=1 // pred_check_branch
      %36 = sbr.rel (0) target = $region41
    $region40: #{tpu_custom_call.1} parent=1 // pred_region
      _
    $region41: #{tpu_custom_call.1} parent=1 // pred_fallthru
      _
    // Predicated region
    $region42: #{tpu_custom_call.1} parent=1 // pred_check
      _
    $region43: #{tpu_custom_call.1} parent=1 // pred_check_branch
      %38 = sbr.rel (0) target = $region45
    $region44: #{tpu_custom_call.1} parent=1 // pred_region
      _
    $region45: #{tpu_custom_call.1} parent=1 // pred_fallthru
      _
    %v40 = vld [vmem:[%s9] sm:$0x7f]
    %v41 = vld [vmem:[%s0] sm:$0xf]
    %v42 = vld [vmem:[%s5] sm:$0xf]
    %v43 = vld [vmem:[%s5 + $0x4] sm:$0xf]
    %v44 = vld [vmem:[%s5 + $0x8] sm:$0xf]
    %v45 = vld [vmem:[%s5 + $0xc] sm:$0xf]
    %v46 = vlaneseq
    %v47 = vshrl.u32 %v46, 7
    %v48 = vsub.s32 0, %v47
    %v49 = vrot.slane %v40, %v48
    %v54 = vunpack.c.l.b16 %v42
    %v55 = vunpack.c.l.b16 %v43
    %v56 = vunpack.c.l.b16 %v44
    %v57 = vunpack.c.l.b16 %v45
    %v58 = vpack.c.b16 %v55, %v54
    %v59 = vpack.c.b16 %v57, %v56
    %vm62 = vcmask 261120
    %v64 = vsel %vm62, %v41, 0
    %66 = vmatprep.subr.bf16.mxu0 0
    %67 = vmatpush1.bf16.msra.mxu0 %v58
    %68 = vmatprep.subr.bf16.mxu0 0
    %69 = vmatpush1.bf16.msra.mxu0 %v59
    %70 = vmatprep.subr.bf16.mxu0 0
    %71 = vmatpush1.bf16.msra.mxu0 0
    %72 = vmatprep.subr.bf16.mxu0 0
    %73 = vmatpush1.bf16.msra.mxu0 0
    %74 = vmatprep.subr.bf16.mxu0 0
    %75 = vmatpush1.bf16.msra.mxu0 0
    %76 = vmatprep.subr.bf16.mxu0 0
    %77 = vmatpush1.bf16.msra.mxu0 0
    %78 = vmatprep.subr.bf16.mxu0 0
    %79 = vmatpush1.bf16.msra.mxu0 0
    %80 = vmatprep.subr.bf16.mxu0 0
    %81 = vmatpush1.bf16.msra.mxu0 0
    %82 = vmatprep.subr.bf16.mxu0 0
    %83 = vmatpush1.bf16.msra.mxu0 0
    %84 = vmatprep.subr.bf16.mxu0 0
    %85 = vmatpush1.bf16.msra.mxu0 0
    %86 = vmatprep.subr.bf16.mxu0 0
    %87 = vmatpush1.bf16.msra.mxu0 0
    %88 = vmatprep.subr.bf16.mxu0 0
    %89 = vmatpush1.bf16.msra.mxu0 0
    %90 = vmatprep.subr.bf16.mxu0 0
    %91 = vmatpush1.bf16.msra.mxu0 0
    %92 = vmatprep.subr.bf16.mxu0 0
    %93 = vmatpush1.bf16.msra.mxu0 0
    %94 = vmatprep.subr.bf16.mxu0 0
    %95 = vmatpush1.bf16.msra.mxu0 0
    %96 = vmatprep.subr.bf16.mxu0 0
    %97 = vmatpush1.bf16.msra.mxu0 0
    %98 = vmatprep.mubr.bf16.mxu0 0
    %99 = vmatmul.mubr.bf16.gmra.mrb[0].mxu0 %v64
    %v100 = vpop.f32.mrb[0].mxu0
    %v101 = vadd.f32 %v49, %v100
    %v102 = vpop.f32.mrb[0].mxu0
    %v103 = vpop.f32.mrb[0].mxu0
    %v104 = vpop.f32.mrb[0].mxu0
    %105 = vdwg.mxu0
    %v106 = vpack.c.bf16 %v101, %v101
    %v107 = vld [vmem:[%s1] sm:$0xf]
    %v108 = vld [vmem:[%s3] sm:$0x1]
    %v110 = vlaneseq
    %v111 = vshrl.u32 %v110, 7
    %v112 = vsub.s32 0, %v111
    %v113 = vrot.slane %v108, %v112
    %v116 = vsel %vm62, %v106, 0
    %v119 = vsel %vm62, %v107, 0
    %121 = vmatprep.subr.bf16.mxu0 0
    %122 = vmatpush1.bf16.xpose.msra.mxu0 %v119
    %123 = vmatprep.subr.bf16.mxu0 0
    %124 = vmatpush1.bf16.xpose.msra.mxu0 0
    %125 = vmatprep.subr.bf16.mxu0 0
    %126 = vmatpush1.bf16.xpose.msra.mxu0 0
    %127 = vmatprep.subr.bf16.mxu0 0
    %128 = vmatpush1.bf16.xpose.msra.mxu0 0
    %129 = vmatprep.subr.bf16.mxu0 0
    %130 = vmatpush1.bf16.xpose.msra.mxu0 0
    %131 = vmatprep.subr.bf16.mxu0 0
    %132 = vmatpush1.bf16.xpose.msra.mxu0 0
    %133 = vmatprep.subr.bf16.mxu0 0
    %134 = vmatpush1.bf16.xpose.msra.mxu0 0
    %135 = vmatprep.subr.bf16.mxu0 0
    %136 = vmatpush1.bf16.xpose.msra.mxu0 0
    %137 = vmatprep.subr.bf16.mxu0 0
    %138 = vmatpush1.bf16.xpose.msra.mxu0 0
    %139 = vmatprep.subr.bf16.mxu0 0
    %140 = vmatpush1.bf16.xpose.msra.mxu0 0
    %141 = vmatprep.subr.bf16.mxu0 0
    %142 = vmatpush1.bf16.xpose.msra.mxu0 0
    %143 = vmatprep.subr.bf16.mxu0 0
    %144 = vmatpush1.bf16.xpose.msra.mxu0 0
    %145 = vmatprep.subr.bf16.mxu0 0
    %146 = vmatpush1.bf16.xpose.msra.mxu0 0
    %147 = vmatprep.subr.bf16.mxu0 0
    %148 = vmatpush1.bf16.xpose.msra.mxu0 0
    %149 = vmatprep.subr.bf16.mxu0 0
    %150 = vmatpush1.bf16.xpose.msra.mxu0 0
    %151 = vmatprep.subr.bf16.mxu0 0
    %152 = vmatpush1.bf16.xpose.msra.mxu0 0
    %153 = vmatprep.mubr.bf16.mxu0 0
    %154 = vmatmul.mubr.bf16.gmra.mrb[0].mxu0 %v116
    %v155 = vpop.f32.mrb[0].mxu0
    %v156 = vadd.f32 %v113, %v155
    %v157 = vpop.f32.mrb[0].mxu0
    %v158 = vpop.f32.mrb[0].mxu0
    %v159 = vpop.f32.mrb[0].mxu0
    %160 = vdwg.mxu0
    %vm161 = vcmask 64512
    %v162 = vsel %vm161, %v156, -inf
    %163 = vmax.xlane.f32.xlu0 %v162
    %v164 = vpop.xlane.xlu0 %163
    %v165 = vsub.f32 %v156, %v164
    %v166 = vmul.f32 %v165, 1.442695
    %v167 = vpow.pop %v166
    %v168 = vsel %vm161, %v167, 0.0
    %169 = vadd.xlane.f32.xlu0 %v168
    %v170 = vpop.xlane.xlu0 %169
    %v171 = vrcp.pop %v170
    %v172 = vmul.f32 %v167, %v171
    %v173 = vpack.c.bf16 %v172, %v172
    %v174 = vld [vmem:[%s2] sm:$0xf]
    %v176 = vsel %vm161, %v173, 0
    %vm178 = vcmask 1043456
    %v180 = vsel %vm178, %v174, 0
    %182 = vmatprep.subr.bf16.mxu0 0
    %183 = vmatpush1.bf16.msra.mxu0 %v180
    %184 = vmatprep.subr.bf16.mxu0 0
    %185 = vmatpush1.bf16.msra.mxu0 0
    %186 = vmatprep.subr.bf16.mxu0 0
    %187 = vmatpush1.bf16.msra.mxu0 0
    %188 = vmatprep.subr.bf16.mxu0 0
    %189 = vmatpush1.bf16.msra.mxu0 0
    %190 = vmatprep.subr.bf16.mxu0 0
    %191 = vmatpush1.bf16.msra.mxu0 0
    %192 = vmatprep.subr.bf16.mxu0 0
    %193 = vmatpush1.bf16.msra.mxu0 0
    %194 = vmatprep.subr.bf16.mxu0 0
    %195 = vmatpush1.bf16.msra.mxu0 0
    %196 = vmatprep.subr.bf16.mxu0 0
    %197 = vmatpush1.bf16.msra.mxu0 0
    %198 = vmatprep.subr.bf16.mxu0 0
    %199 = vmatpush1.bf16.msra.mxu0 0
    %200 = vmatprep.subr.bf16.mxu0 0
    %201 = vmatpush1.bf16.msra.mxu0 0
    %202 = vmatprep.subr.bf16.mxu0 0
    %203 = vmatpush1.bf16.msra.mxu0 0
    %204 = vmatprep.subr.bf16.mxu0 0
    %205 = vmatpush1.bf16.msra.mxu0 0
    %206 = vmatprep.subr.bf16.mxu0 0
    %207 = vmatpush1.bf16.msra.mxu0 0
    %208 = vmatprep.subr.bf16.mxu0 0
    %209 = vmatpush1.bf16.msra.mxu0 0
    %210 = vmatprep.subr.bf16.mxu0 0
    %211 = vmatpush1.bf16.msra.mxu0 0
    %212 = vmatprep.subr.bf16.mxu0 0
    %213 = vmatpush1.bf16.msra.mxu0 0
    %214 = vmatprep.mubr.bf16.mxu0 0
    %215 = vmatmul.mubr.bf16.gmra.mrb[0].mxu0 %v176
    %v216 = vpop.f32.mrb[0].mxu0
    %v217 = vadd.f32 0.0, %v216
    %v218 = vpop.f32.mrb[0].mxu0
    %v219 = vpop.f32.mrb[0].mxu0
    %v220 = vpop.f32.mrb[0].mxu0
    %221 = vdwg.mxu0
    %v222 = vpack.c.bf16 %v217, %v217
    %v223 = vld [vmem:[%s6] sm:$0xf]
    %v224 = vld [vmem:[%s6 + $0x4] sm:$0xf]
    %v225 = vld [vmem:[%s6 + $0x8] sm:$0xf]
    %v226 = vld [vmem:[%s6 + $0xc] sm:$0xf]
    %v227 = vlaneseq
    %v228 = vshrl.u32 %v227, 7
    %v229 = vsub.s32 1, %v228
    %v230 = vrot.slane %v40, %v229
    %v235 = vunpack.c.l.b16 %v223
    %v236 = vunpack.c.l.b16 %v224
    %v237 = vunpack.c.l.b16 %v225
    %v238 = vunpack.c.l.b16 %v226
    %v239 = vpack.c.b16 %v236, %v235
    %v240 = vpack.c.b16 %v238, %v237
    %v244 = vsel %vm62, %v222, 0
    %246 = vmatprep.subr.bf16.mxu0 0
    %247 = vmatpush1.bf16.msra.mxu0 %v239
    %248 = vmatprep.subr.bf16.mxu0 0
    %249 = vmatpush1.bf16.msra.mxu0 %v240
    %250 = vmatprep.subr.bf16.mxu0 0
    %251 = vmatpush1.bf16.msra.mxu0 0
    %252 = vmatprep.subr.bf16.mxu0 0
    %253 = vmatpush1.bf16.msra.mxu0 0
    %254 = vmatprep.subr.bf16.mxu0 0
    %255 = vmatpush1.bf16.msra.mxu0 0
    %256 = vmatprep.subr.bf16.mxu0 0
    %257 = vmatpush1.bf16.msra.mxu0 0
    %258 = vmatprep.subr.bf16.mxu0 0
    %259 = vmatpush1.bf16.msra.mxu0 0
    %260 = vmatprep.subr.bf16.mxu0 0
    %261 = vmatpush1.bf16.msra.mxu0 0
    %262 = vmatprep.subr.bf16.mxu0 0
    %263 = vmatpush1.bf16.msra.mxu0 0
    %264 = vmatprep.subr.bf16.mxu0 0
    %265 = vmatpush1.bf16.msra.mxu0 0
    %266 = vmatprep.subr.bf16.mxu0 0
    %267 = vmatpush1.bf16.msra.mxu0 0
    %268 = vmatprep.subr.bf16.mxu0 0
    %269 = vmatpush1.bf16.msra.mxu0 0
    %270 = vmatprep.subr.bf16.mxu0 0
    %271 = vmatpush1.bf16.msra.mxu0 0
    %272 = vmatprep.subr.bf16.mxu0 0
    %273 = vmatpush1.bf16.msra.mxu0 0
    %274 = vmatprep.subr.bf16.mxu0 0
    %275 = vmatpush1.bf16.msra.mxu0 0
    %276 = vmatprep.subr.bf16.mxu0 0
    %277 = vmatpush1.bf16.msra.mxu0 0
    %278 = vmatprep.mubr.bf16.mxu0 0
    %279 = vmatmul.mubr.bf16.gmra.mrb[0].mxu0 %v244
    %v280 = vpop.f32.mrb[0].mxu0
    %v281 = vadd.f32 %v230, %v280
    %v282 = vpop.f32.mrb[0].mxu0
    %v283 = vpop.f32.mrb[0].mxu0
    %v284 = vpop.f32.mrb[0].mxu0
    %285 = vdwg.mxu0
    %v286 = vld [vmem:[%s4] sm:$0xff]
    %v287 = vadd.f32 %v286, %v281
    %v288 = vsel %vm62, %v287, 0.0
    %289 = vadd.xlane.f32.xlu0 %v288
    %v290 = vpop.xlane.xlu0 %289
    %v291 = vrcp.pop 32.0
    %v292 = vmul.f32 %v290, %v291
    %v293 = vmul.f32 %v287, %v287
    %v294 = vsel %vm62, %v293, 0.0
    %295 = vadd.xlane.f32.xlu0 %v294
    %v296 = vpop.xlane.xlu0 %295
    %v297 = vmul.f32 %v296, %v291
    %v298 = vmul.f32 %v292, %v292
    %v299 = vsub.f32 %v297, %v298
    %v300 = vsub.f32 %v287, %v292
    %v301 = vadd.f32 %v299, 1e-05
    %v302 = vrsqrt.pop %v301
    %v303 = vmul.f32 %v300, %v302
    %v304 = vlaneseq
    %v305 = vshrl.u32 %v304, 7
    %v306 = vsub.s32 3, %v305
    %v307 = vrot.slane %v40, %v306
    %v308 = vmul.f32 %v303, %v307
    %v309 = vlaneseq
    %v310 = vshrl.u32 %v309, 7
    %v311 = vsub.s32 4, %v310
    %v312 = vrot.slane %v40, %v311
    %v313 = vadd.f32 %v308, %v312
    %v314 = vpack.c.bf16 %v313, %v313
    %v315 = vld [vmem:[%s7] sm:$0xf]
    %v316 = vld [vmem:[%s7 + $0x4] sm:$0xf]
    %v317 = vld [vmem:[%s7 + $0x8] sm:$0xf]
    %v318 = vld [vmem:[%s7 + $0xc] sm:$0xf]
    %v319 = vld [vmem:[%s10] sm:$0x1]
    %v321 = vlaneseq
    %v322 = vshrl.u32 %v321, 7
    %v323 = vsub.s32 0, %v322
    %v324 = vrot.slane %v319, %v323
    %v330 = vunpack.c.l.b16 %v315
    %v331 = vunpack.c.l.b16 %v316
    %v332 = vunpack.c.l.b16 %v317
    %v333 = vunpack.c.l.b16 %v318
    %v334 = vpack.c.b16 %v331, %v330
    %v335 = vpack.c.b16 %v333, %v332
    %v339 = vsel %vm62, %v314, 0
    %341 = vmatprep.subr.bf16.mxu0 0
    %342 = vmatpush1.bf16.msra.mxu0 %v334
    %343 = vmatprep.subr.bf16.mxu0 0
    %344 = vmatpush1.bf16.msra.mxu0 %v335
    %345 = vmatprep.subr.bf16.mxu0 0
    %346 = vmatpush1.bf16.msra.mxu0 0
    %347 = vmatprep.subr.bf16.mxu0 0
    %348 = vmatpush1.bf16.msra.mxu0 0
    %349 = vmatprep.subr.bf16.mxu0 0
    %350 = vmatpush1.bf16.msra.mxu0 0
    %351 = vmatprep.subr.bf16.mxu0 0
    %352 = vmatpush1.bf16.msra.mxu0 0
    %353 = vmatprep.subr.bf16.mxu0 0
    %354 = vmatpush1.bf16.msra.mxu0 0
    %355 = vmatprep.subr.bf16.mxu0 0
    %356 = vmatpush1.bf16.msra.mxu0 0
    %357 = vmatprep.subr.bf16.mxu0 0
    %358 = vmatpush1.bf16.msra.mxu0 0
    %359 = vmatprep.subr.bf16.mxu0 0
    %360 = vmatpush1.bf16.msra.mxu0 0
    %361 = vmatprep.subr.bf16.mxu0 0
    %362 = vmatpush1.bf16.msra.mxu0 0
    %363 = vmatprep.subr.bf16.mxu0 0
    %364 = vmatpush1.bf16.msra.mxu0 0
    %365 = vmatprep.subr.bf16.mxu0 0
    %366 = vmatpush1.bf16.msra.mxu0 0
    %367 = vmatprep.subr.bf16.mxu0 0
    %368 = vmatpush1.bf16.msra.mxu0 0
    %369 = vmatprep.subr.bf16.mxu0 0
    %370 = vmatpush1.bf16.msra.mxu0 0
    %371 = vmatprep.subr.bf16.mxu0 0
    %372 = vmatpush1.bf16.msra.mxu0 0
    %373 = vmatprep.mubr.bf16.mxu0 0
    %374 = vmatmul.mubr.bf16.gmra.mrb[0].mxu0 %v339
    %v375 = vpop.f32.mrb[0].mxu0
    %v376 = vadd.f32 %v324, %v375
    %v377 = vpop.f32.mrb[0].mxu0
    %v378 = vpop.f32.mrb[0].mxu0
    %v379 = vpop.f32.mrb[0].mxu0
    %380 = vdwg.mxu0
    %v381 = vmax.f32 %v376, 0.0
    %v382 = vpack.c.bf16 %v381, %v381
    %v383 = vld [vmem:[%s8] sm:$0xf]
    %v384 = vld [vmem:[%s8 + $0x4] sm:$0xf]
    %v385 = vld [vmem:[%s8 + $0x8] sm:$0xf]
    %v386 = vld [vmem:[%s8 + $0xc] sm:$0xf]
    %v387 = vld [vmem:[%s8 + $0x10] sm:$0xf]
    %v388 = vld [vmem:[%s8 + $0x14] sm:$0xf]
    %v389 = vld [vmem:[%s8 + $0x18] sm:$0xf]
    %v390 = vld [vmem:[%s8 + $0x1c] sm:$0xf]
    %v391 = vld [vmem:[%s8 + $0x20] sm:$0xf]
    %v392 = vld [vmem:[%s8 + $0x24] sm:$0xf]
    %v393 = vld [vmem:[%s8 + $0x28] sm:$0xf]
    %v394 = vld [vmem:[%s8 + $0x2c] sm:$0xf]
    %v395 = vld [vmem:[%s8 + $0x30] sm:$0xf]
    %v396 = vld [vmem:[%s8 + $0x34] sm:$0xf]
    %v397 = vld [vmem:[%s8 + $0x38] sm:$0xf]
    %v398 = vld [vmem:[%s8 + $0x3c] sm:$0xf]
    %v399 = vlaneseq
    %v400 = vshrl.u32 %v399, 7
    %v401 = vsub.s32 2, %v400
    %v402 = vrot.slane %v40, %v401
    %v419 = vunpack.c.l.b16 %v383
    %v420 = vunpack.c.l.b16 %v384
    %v421 = vunpack.c.l.b16 %v385
    %v422 = vunpack.c.l.b16 %v386
    %v423 = vunpack.c.l.b16 %v387
    %v424 = vunpack.c.l.b16 %v388
    %v425 = vunpack.c.l.b16 %v389
    %v426 = vunpack.c.l.b16 %v390
    %v427 = vunpack.c.l.b16 %v391
    %v428 = vunpack.c.l.b16 %v392
    %v429 = vunpack.c.l.b16 %v393
    %v430 = vunpack.c.l.b16 %v394
    %v431 = vunpack.c.l.b16 %v395
    %v432 = vunpack.c.l.b16 %v396
    %v433 = vunpack.c.l.b16 %v397
    %v434 = vunpack.c.l.b16 %v398
    %v435 = vpack.c.b16 %v420, %v419
    %v436 = vpack.c.b16 %v422, %v421
    %v437 = vpack.c.b16 %v424, %v423
    %v438 = vpack.c.b16 %v426, %v425
    %v439 = vpack.c.b16 %v428, %v427
    %v440 = vpack.c.b16 %v430, %v429
    %v441 = vpack.c.b16 %v432, %v431
    %v442 = vpack.c.b16 %v434, %v433
    %451 = vmatprep.subr.bf16.mxu0 0
    %452 = vmatpush1.bf16.msra.mxu0 %v435
    %453 = vmatprep.subr.bf16.mxu0 0
    %454 = vmatpush1.bf16.msra.mxu0 %v436
    %455 = vmatprep.subr.bf16.mxu0 0
    %456 = vmatpush1.bf16.msra.mxu0 %v437
    %457 = vmatprep.subr.bf16.mxu0 0
    %458 = vmatpush1.bf16.msra.mxu0 %v438
    %459 = vmatprep.subr.bf16.mxu0 0
    %460 = vmatpush1.bf16.msra.mxu0 %v439
    %461 = vmatprep.subr.bf16.mxu0 0
    %462 = vmatpush1.bf16.msra.mxu0 %v440
    %463 = vmatprep.subr.bf16.mxu0 0
    %464 = vmatpush1.bf16.msra.mxu0 %v441
    %465 = vmatprep.subr.bf16.mxu0 0
    %466 = vmatpush1.bf16.msra.mxu0 %v442
    %467 = vmatprep.subr.bf16.mxu0 0
    %468 = vmatpush1.bf16.msra.mxu0 0
    %469 = vmatprep.subr.bf16.mxu0 0
    %470 = vmatpush1.bf16.msra.mxu0 0
    %471 = vmatprep.subr.bf16.mxu0 0
    %472 = vmatpush1.bf16.msra.mxu0 0
    %473 = vmatprep.subr.bf16.mxu0 0
    %474 = vmatpush1.bf16.msra.mxu0 0
    %475 = vmatprep.subr.bf16.mxu0 0
    %476 = vmatpush1.bf16.msra.mxu0 0
    %477 = vmatprep.subr.bf16.mxu0 0
    %478 = vmatpush1.bf16.msra.mxu0 0
    %479 = vmatprep.subr.bf16.mxu0 0
    %480 = vmatpush1.bf16.msra.mxu0 0
    %481 = vmatprep.subr.bf16.mxu0 0
    %482 = vmatpush1.bf16.msra.mxu0 0
    %483 = vmatprep.mubr.bf16.mxu0 0
    %484 = vmatmul.mubr.bf16.gmra.mrb[0].mxu0 %v382
    %v485 = vpop.f32.mrb[0].mxu0
    %v486 = vadd.f32 %v402, %v485
    %v487 = vpop.f32.mrb[0].mxu0
    %v488 = vpop.f32.mrb[0].mxu0
    %v489 = vpop.f32.mrb[0].mxu0
    %490 = vdwg.mxu0
    %v491 = vadd.f32 %v313, %v486
    %v492 = vsel %vm62, %v491, 0.0
    %493 = vadd.xlane.f32.xlu0 %v492
    %v494 = vpop.xlane.xlu0 %493
    %v495 = vmul.f32 %v494, %v291
    %v496 = vmul.f32 %v491, %v491
    %v497 = vsel %vm62, %v496, 0.0
    %498 = vadd.xlane.f32.xlu0 %v497
    %v499 = vpop.xlane.xlu0 %498
    %v500 = vmul.f32 %v499, %v291
    %v501 = vmul.f32 %v495, %v495
    %v502 = vsub.f32 %v500, %v501
    %v503 = vsub.f32 %v491, %v495
    %v504 = vadd.f32 %v502, 1e-05
    %v505 = vrsqrt.pop %v504
    %v506 = vmul.f32 %v503, %v505
    %v507 = vlaneseq
    %v508 = vshrl.u32 %v507, 7
    %v509 = vsub.s32 5, %v508
    %v510 = vrot.slane %v40, %v509
    %v511 = vmul.f32 %v506, %v510
    %v512 = vlaneseq
    %v513 = vshrl.u32 %v512, 7
    %v514 = vsub.s32 6, %v513
    %v515 = vrot.slane %v40, %v514
    %v516 = vadd.f32 %v511, %v515
    %v517 = vpack.c.bf16 %v516, %v516
    %vm518 = vcmask 257024
    %519 = vst.msk [vmem:[#allocation2] sm:$0xf] %vm518, %v517
    // Predicated region
    $region46: #{tpu_custom_call.1} parent=1 // pred_check
      _
    $region47: #{tpu_custom_call.1} parent=1 // pred_check_branch
      %521 = sbr.rel (0) target = $region49
    $region48: #{tpu_custom_call.1} parent=1 // pred_region
      %s523 = ssub.s32 64, 64
      %524 = vsyncadd [#allocation3], %s523
      %s526 = sshll.u32 [#allocation2], 4
      %s527 = int_to_ptr.vmem [resolvable:$true] %s526
      %529 = dma.vmem_to_hbm [thread:$0]  %s527, 64, %s11, [#allocation3]
    $region49: #{tpu_custom_call.1} parent=1 // pred_fallthru
      _
    // Predicated region
    $region50: #{tpu_custom_call.1} parent=1 // pred_check
      _
    $region51: #{tpu_custom_call.1} parent=1 // pred_check_branch
      %531 = sbr.rel (0) target = $region53
    $region52: #{tpu_custom_call.1} parent=1 // pred_region
      %532 = dma.done [#allocation3], 64
    $region53: #{tpu_custom_call.1} parent=1 // pred_fallthru
      _
    %533 = vsyncpa [#allocation3], 1

</llo_original>
